<compile_context>
chip_gen: v5e
topology: v5e:2x2
jax: 0.10.0
libtpu: 0.0.40
codegen_flags: <defaults>
</compile_context>

<pallas_src>
import jax
import jax.numpy as jnp
from jax import lax
from jax.experimental import pallas as pl
from jax.experimental.pallas import tpu as pltpu

# ----- model hyperparameters (match the PyTorch module instance) -----
BATCH = 2
SEQ_LEN = 8          # `sequence_length` global in the PyTorch code
INPUT_SIZE = 16
HIDDEN_SIZE = 32
NUM_LAYERS = 2
NUM_CLASSES = 10

# ----- TPU-friendly padded shapes -----
B_PAD = 8            # batch padded to one sublane group
D_PAD = 32           # input feature dim padded 16 -> 32 (sublane-aligned K)
H = HIDDEN_SIZE      # hidden stays at its live width 32 (no lane padding)
C_PAD = 128          # classes padded to a full lane-dense tile for the store


# ---------------------------------------------------------------------
# Fused kernel: both RNN layers interleaved + FC folded in, one launch.
# ---------------------------------------------------------------------
def fused_rnn_fc_kernel(x_ref, wih_ref, whh_ref, b_ref, wfc_ref, bfc_ref, o_ref):
    """
      x_ref   : (T*B_PAD, D_PAD)   bf16, time-major, zero-padded input slab
      wih_ref : (L, D_PAD, H)      bf16, per-layer W_ih^T (layer0 rows 16..31 zero)
      whh_ref : (L, H, H)          bf16, per-layer W_hh^T
      b_ref   : (L, 1, H)          f32,  per-layer b_ih + b_hh
      wfc_ref : (T, H, C_PAD)      bf16, FC weight split per time step
      bfc_ref : (1, C_PAD)         f32,  FC bias (zero-padded)
      o_ref   : (B_PAD, C_PAD)     f32,  padded logits
    """
    T, Bp = SEQ_LEN, B_PAD
    f32, bf16 = jnp.float32, jnp.bfloat16

    wih0 = wih_ref[0]
    wih1 = wih_ref[1]
    whh0 = whh_ref[0]
    whh1 = whh_ref[1]
    b1 = jnp.broadcast_to(b_ref[1], (Bp, H))          # hoisted out of the loop

    # Layer-1 input projection hoisted over the whole sequence: one MXU matmul.
    pre1 = jnp.dot(x_ref[...], wih0, preferred_element_type=f32) + b_ref[0]  # (T*Bp, H)

    # Warm-up: layer-1 step 0 (h0 = zeros -> just tanh of the projection).
    h1 = jnp.tanh(pre1[0:Bp, :])                       # (Bp, H) f32
    h2 = jnp.zeros((Bp, H), f32)
    logits = jnp.zeros((Bp, C_PAD), f32)

    # Static unroll.  Within iteration t, layer-2 step t (uses h1_t) and
    # layer-1 step t+1 (produces h1_{t+1}) are data-independent, so the LLO
    # scheduler overlaps their MXU / EUP work.
    for t in range(T):
        h1b = h1.astype(bf16)
        # ---- layer-2 step t ----
        pre2 = jnp.dot(h1b, wih1, preferred_element_type=f32) + b1
        h2 = jnp.tanh(pre2 + jnp.dot(h2.astype(bf16), whh1,
                                     preferred_element_type=f32))
        # FC folded in: logits = sum_t h2_t @ Wfc_t  (chain of accumulating dots)
        logits = logits + jnp.dot(h2.astype(bf16), wfc_ref[t],
                                  preferred_element_type=f32)
        # ---- layer-1 step t+1 (independent of everything above) ----
        if t + 1 < T:
            h1 = jnp.tanh(pre1[(t + 1) * Bp:(t + 2) * Bp, :]
                          + jnp.dot(h1b, whh0, preferred_element_type=f32))

    o_ref[...] = (logits + bfc_ref[...]).astype(o_ref.dtype)   # full (8,128) store


# ---------------------------------------------------------------------
# Wrapper: pad the input to a time-major bf16 slab and launch once.
# ---------------------------------------------------------------------
def rnn_forward(x, packed):
    B, T, D = x.shape
    x_pad = jnp.zeros((T, B_PAD, D_PAD), jnp.bfloat16)
    x_pad = x_pad.at[:, :B, :D].set(jnp.transpose(x, (1, 0, 2)).astype(jnp.bfloat16))
    x_pad = x_pad.reshape(T * B_PAD, D_PAD)

    inputs = (x_pad, packed["wih"], packed["whh"], packed["b"],
              packed["wfc"], packed["bfc"])

    flops = (2 * (T * B_PAD) * D_PAD * H                 # layer-1 projection
             + T * 2 * B_PAD * H * H                     # layer-1 recurrence
             + T * 2 * (2 * B_PAD * H * H)               # layer-2 (wih1 + whh1)
             + T * 2 * B_PAD * H * C_PAD)                # FC
    transcendentals = NUM_LAYERS * T * B_PAD * H
    bytes_accessed = (sum(int(a.size) * a.dtype.itemsize for a in inputs)
                      + B_PAD * C_PAD * 4)

    out_pad = pl.pallas_call(
        fused_rnn_fc_kernel,
        out_shape=jax.ShapeDtypeStruct((B_PAD, C_PAD), jnp.float32),
        in_specs=[pl.BlockSpec(memory_space=pltpu.MemorySpace.VMEM)
                  for _ in inputs],
        out_specs=pl.BlockSpec(memory_space=pltpu.MemorySpace.VMEM),
        cost_estimate=pl.CostEstimate(flops=flops,
                                      transcendentals=transcendentals,
                                      bytes_accessed=bytes_accessed),
    )(*inputs)
    return out_pad[:B, :NUM_CLASSES]


# ---------------------------------------------------------------------
# Parameter init (PyTorch default U(-1/sqrt(fan), 1/sqrt(fan))) + packing
# into the compact, kernel-ready layout (bf16 weights, f32 biases).
# ---------------------------------------------------------------------
def init_params(key):
    params = {"rnn": [], "fc": {}}
    k = key
    bound_h = 1.0 / (HIDDEN_SIZE ** 0.5)
    for l in range(NUM_LAYERS):
        d_in = INPUT_SIZE if l == 0 else HIDDEN_SIZE
        k, k1, k2, k3, k4 = jax.random.split(k, 5)
        params["rnn"].append({
            "w_ih": jax.random.uniform(k1, (HIDDEN_SIZE, d_in), jnp.float32, -bound_h, bound_h),
            "w_hh": jax.random.uniform(k2, (HIDDEN_SIZE, HIDDEN_SIZE), jnp.float32, -bound_h, bound_h),
            "b_ih": jax.random.uniform(k3, (HIDDEN_SIZE,), jnp.float32, -bound_h, bound_h),
            "b_hh": jax.random.uniform(k4, (HIDDEN_SIZE,), jnp.float32, -bound_h, bound_h),
        })
    fc_in = HIDDEN_SIZE * SEQ_LEN
    bound_f = 1.0 / (fc_in ** 0.5)
    k, k1, k2 = jax.random.split(k, 3)
    params["fc"]["w"] = jax.random.uniform(k1, (NUM_CLASSES, fc_in), jnp.float32, -bound_f, bound_f)
    params["fc"]["b"] = jax.random.uniform(k2, (NUM_CLASSES,), jnp.float32, -bound_f, bound_f)
    return params


def pack_params(raw):
    wih = jnp.zeros((NUM_LAYERS, D_PAD, H), jnp.float32)
    whh = jnp.zeros((NUM_LAYERS, H, H), jnp.float32)
    b = jnp.zeros((NUM_LAYERS, 1, H), jnp.float32)
    for l, p in enumerate(raw["rnn"]):
        d_in = p["w_ih"].shape[1]
        wih = wih.at[l, :d_in, :].set(p["w_ih"].T)
        whh = whh.at[l].set(p["w_hh"].T)
        b = b.at[l, 0].set(p["b_ih"] + p["b_hh"])
    # FC: (C, T*H) -> (T*H, C) -> (T, H, C); row index t*H + h matches out.reshape(B,-1).
    wfc3 = raw["fc"]["w"].T.reshape(SEQ_LEN, HIDDEN_SIZE, NUM_CLASSES)
    wfc = jnp.zeros((SEQ_LEN, H, C_PAD), jnp.float32).at[:, :, :NUM_CLASSES].set(wfc3)
    bfc = jnp.zeros((1, C_PAD), jnp.float32).at[0, :NUM_CLASSES].set(raw["fc"]["b"])
    return {"wih": wih.astype(jnp.bfloat16),
            "whh": whh.astype(jnp.bfloat16),
            "b": b,
            "wfc": wfc.astype(jnp.bfloat16),
            "bfc": bfc}


# ---------------------------------------------------------------------
# Plain-JAX reference with the SAME bf16 rounding at the same places the
# kernel applies it (so the tolerance stays tight and meaningful).
# ---------------------------------------------------------------------
def reference_forward(x, raw):
    bf16, f32 = jnp.bfloat16, jnp.float32
    seq = x
    for l in range(NUM_LAYERS):
        p = raw["rnn"][l]
        wih_b = p["w_ih"].T.astype(bf16)
        whh_b = p["w_hh"].T.astype(bf16)
        bias = p["b_ih"] + p["b_hh"]
        h = jnp.zeros((x.shape[0], HIDDEN_SIZE), f32)
        outs = []
        for t in range(SEQ_LEN):
            pre = jnp.dot(seq[:, t, :].astype(bf16), wih_b,
                          preferred_element_type=f32) + bias
            h = jnp.tanh(pre + jnp.dot(h.astype(bf16), whh_b,
                                       preferred_element_type=f32))
            outs.append(h)
        seq = jnp.stack(outs, axis=1)                 # (B, T, H)
    flat = seq.reshape(x.shape[0], -1)
    return (jnp.dot(flat.astype(bf16), raw["fc"]["w"].T.astype(bf16),
                    preferred_element_type=f32) + raw["fc"]["b"])


if __name__ == "__main__":
    key = jax.random.PRNGKey(0)
    k_x, k_p = jax.random.split(key)
    x = jax.random.normal(k_x, (BATCH, SEQ_LEN, INPUT_SIZE), jnp.float32)
    raw = init_params(k_p)
    packed = pack_params(raw)   # pack once; keep device-resident across calls

    out = jax.jit(rnn_forward)(x, packed)
    jax.block_until_ready(out)
    assert out.shape == (BATCH, NUM_CLASSES)

    # Numerical sanity check against a reference with identical bf16 rounding.
    ref = reference_forward(x, raw)
    max_err = float(jnp.max(jnp.abs(out - ref)))
    assert max_err < 2e-2, f"mismatch vs reference: {max_err}"

    print("KERNEL_OK")
</pallas_src>

<mosaic_0001>
module attributes {stable_mosaic.version = 11 : i64} {
  func.func @fused_rnn_fc_kernel(%arg0: memref<64x32xbf16, #tpu.memory_space<vmem>>, %arg1: memref<2x32x32xbf16, #tpu.memory_space<vmem>>, %arg2: memref<2x32x32xbf16, #tpu.memory_space<vmem>>, %arg3: memref<2x1x32xf32, #tpu.memory_space<vmem>>, %arg4: memref<8x32x128xbf16, #tpu.memory_space<vmem>>, %arg5: memref<1x128xf32, #tpu.memory_space<vmem>>, %arg6: memref<8x128xf32, #tpu.memory_space<vmem>>) attributes {dimension_semantics = [], scalar_prefetch = 0 : i64, scratch_operands = 0 : i64, tpu.core_type = #tpu.core_type<tc>} {
    %c0 = arith.constant 0 : index
    %c0_0 = arith.constant 0 : index
    %c0_1 = arith.constant 0 : index
    %0 = vector.load %arg1[%c0, %c0_0, %c0_1] : memref<2x32x32xbf16, #tpu.memory_space<vmem>>, vector<1x32x32xbf16>
    %1 = vector.shape_cast %0 : vector<1x32x32xbf16> to vector<32x32xbf16>
    %c1 = arith.constant 1 : index
    %c0_2 = arith.constant 0 : index
    %c0_3 = arith.constant 0 : index
    %2 = vector.load %arg1[%c1, %c0_2, %c0_3] : memref<2x32x32xbf16, #tpu.memory_space<vmem>>, vector<1x32x32xbf16>
    %3 = vector.shape_cast %2 : vector<1x32x32xbf16> to vector<32x32xbf16>
    %c0_4 = arith.constant 0 : index
    %c0_5 = arith.constant 0 : index
    %c0_6 = arith.constant 0 : index
    %4 = vector.load %arg2[%c0_4, %c0_5, %c0_6] : memref<2x32x32xbf16, #tpu.memory_space<vmem>>, vector<1x32x32xbf16>
    %5 = vector.shape_cast %4 : vector<1x32x32xbf16> to vector<32x32xbf16>
    %c1_7 = arith.constant 1 : index
    %c0_8 = arith.constant 0 : index
    %c0_9 = arith.constant 0 : index
    %6 = vector.load %arg2[%c1_7, %c0_8, %c0_9] : memref<2x32x32xbf16, #tpu.memory_space<vmem>>, vector<1x32x32xbf16>
    %7 = vector.shape_cast %6 : vector<1x32x32xbf16> to vector<32x32xbf16>
    %c1_10 = arith.constant 1 : index
    %c0_11 = arith.constant 0 : index
    %c0_12 = arith.constant 0 : index
    %8 = vector.load %arg3[%c1_10, %c0_11, %c0_12] : memref<2x1x32xf32, #tpu.memory_space<vmem>>, vector<1x1x32xf32>
    %9 = vector.shape_cast %8 : vector<1x1x32xf32> to vector<1x32xf32>
    %10 = vector.shape_cast %9 : vector<1x32xf32> to vector<1x32xf32>
    %11 = vector.broadcast %10 : vector<1x32xf32> to vector<8x32xf32>
    %c0_13 = arith.constant 0 : index
    %c0_14 = arith.constant 0 : index
    %12 = vector.load %arg0[%c0_13, %c0_14] : memref<64x32xbf16, #tpu.memory_space<vmem>>, vector<64x32xbf16>
    %cst = arith.constant dense<0.000000e+00> : vector<64x32xf32>
    %13 = tpu.matmul %12, %1, %cst {dimension_numbers = #tpu.dot_dimension_numbers<[1], [0], [0], [1], [0, 0, 1, 1], [], []>} : vector<64x32xbf16>, vector<32x32xbf16>, vector<64x32xf32> -> vector<64x32xf32>
    %c0_15 = arith.constant 0 : index
    %c0_16 = arith.constant 0 : index
    %c0_17 = arith.constant 0 : index
    %14 = vector.load %arg3[%c0_15, %c0_16, %c0_17] : memref<2x1x32xf32, #tpu.memory_space<vmem>>, vector<1x1x32xf32>
    %15 = vector.shape_cast %14 : vector<1x1x32xf32> to vector<1x32xf32>
    %16 = vector.broadcast %15 : vector<1x32xf32> to vector<64x32xf32>
    %17 = arith.addf %13, %16 : vector<64x32xf32>
    %18 = vector.extract_strided_slice %17 {offsets = [0, 0], sizes = [8, 32], strides = [1, 1]} : vector<64x32xf32> to vector<8x32xf32>
    %19 = math.tanh %18 : vector<8x32xf32>
    %cst_18 = arith.constant 0.000000e+00 : f32
    %20 = vector.broadcast %cst_18 : f32 to vector<8x32xf32>
    %cst_19 = arith.constant 0.000000e+00 : f32
    %21 = vector.broadcast %cst_19 : f32 to vector<8x128xf32>
    %22 = arith.truncf %19 : vector<8x32xf32> to vector<8x32xbf16>
    %cst_20 = arith.constant dense<0.000000e+00> : vector<8x32xf32>
    %23 = tpu.matmul %22, %3, %cst_20 {dimension_numbers = #tpu.dot_dimension_numbers<[1], [0], [0], [1], [0, 0, 1, 1], [], []>} : vector<8x32xbf16>, vector<32x32xbf16>, vector<8x32xf32> -> vector<8x32xf32>
    %24 = arith.addf %23, %11 : vector<8x32xf32>
    %25 = arith.truncf %20 : vector<8x32xf32> to vector<8x32xbf16>
    %cst_21 = arith.constant dense<0.000000e+00> : vector<8x32xf32>
    %26 = tpu.matmul %25, %7, %cst_21 {dimension_numbers = #tpu.dot_dimension_numbers<[1], [0], [0], [1], [0, 0, 1, 1], [], []>} : vector<8x32xbf16>, vector<32x32xbf16>, vector<8x32xf32> -> vector<8x32xf32>
    %27 = arith.addf %24, %26 : vector<8x32xf32>
    %28 = math.tanh %27 : vector<8x32xf32>
    %29 = arith.truncf %28 : vector<8x32xf32> to vector<8x32xbf16>
    %c0_22 = arith.constant 0 : index
    %c0_23 = arith.constant 0 : index
    %c0_24 = arith.constant 0 : index
    %30 = vector.load %arg4[%c0_22, %c0_23, %c0_24] : memref<8x32x128xbf16, #tpu.memory_space<vmem>>, vector<1x32x128xbf16>
    %31 = vector.shape_cast %30 : vector<1x32x128xbf16> to vector<32x128xbf16>
    %cst_25 = arith.constant dense<0.000000e+00> : vector<8x128xf32>
    %32 = tpu.matmul %29, %31, %cst_25 {dimension_numbers = #tpu.dot_dimension_numbers<[1], [0], [0], [1], [0, 0, 1, 1], [], []>} : vector<8x32xbf16>, vector<32x128xbf16>, vector<8x128xf32> -> vector<8x128xf32>
    %33 = arith.addf %21, %32 : vector<8x128xf32>
    %34 = vector.extract_strided_slice %17 {offsets = [8, 0], sizes = [8, 32], strides = [1, 1]} : vector<64x32xf32> to vector<8x32xf32>
    %cst_26 = arith.constant dense<0.000000e+00> : vector<8x32xf32>
    %35 = tpu.matmul %22, %5, %cst_26 {dimension_numbers = #tpu.dot_dimension_numbers<[1], [0], [0], [1], [0, 0, 1, 1], [], []>} : vector<8x32xbf16>, vector<32x32xbf16>, vector<8x32xf32> -> vector<8x32xf32>
    %36 = arith.addf %34, %35 : vector<8x32xf32>
    %37 = math.tanh %36 : vector<8x32xf32>
    %38 = arith.truncf %37 : vector<8x32xf32> to vector<8x32xbf16>
    %cst_27 = arith.constant dense<0.000000e+00> : vector<8x32xf32>
    %39 = tpu.matmul %38, %3, %cst_27 {dimension_numbers = #tpu.dot_dimension_numbers<[1], [0], [0], [1], [0, 0, 1, 1], [], []>} : vector<8x32xbf16>, vector<32x32xbf16>, vector<8x32xf32> -> vector<8x32xf32>
    %40 = arith.addf %39, %11 : vector<8x32xf32>
    %41 = arith.truncf %28 : vector<8x32xf32> to vector<8x32xbf16>
    %cst_28 = arith.constant dense<0.000000e+00> : vector<8x32xf32>
    %42 = tpu.matmul %41, %7, %cst_28 {dimension_numbers = #tpu.dot_dimension_numbers<[1], [0], [0], [1], [0, 0, 1, 1], [], []>} : vector<8x32xbf16>, vector<32x32xbf16>, vector<8x32xf32> -> vector<8x32xf32>
    %43 = arith.addf %40, %42 : vector<8x32xf32>
    %44 = math.tanh %43 : vector<8x32xf32>
    %45 = arith.truncf %44 : vector<8x32xf32> to vector<8x32xbf16>
    %c1_29 = arith.constant 1 : index
    %c0_30 = arith.constant 0 : index
    %c0_31 = arith.constant 0 : index
    %46 = vector.load %arg4[%c1_29, %c0_30, %c0_31] : memref<8x32x128xbf16, #tpu.memory_space<vmem>>, vector<1x32x128xbf16>
    %47 = vector.shape_cast %46 : vector<1x32x128xbf16> to vector<32x128xbf16>
    %cst_32 = arith.constant dense<0.000000e+00> : vector<8x128xf32>
    %48 = tpu.matmul %45, %47, %cst_32 {dimension_numbers = #tpu.dot_dimension_numbers<[1], [0], [0], [1], [0, 0, 1, 1], [], []>} : vector<8x32xbf16>, vector<32x128xbf16>, vector<8x128xf32> -> vector<8x128xf32>
    %49 = arith.addf %33, %48 : vector<8x128xf32>
    %50 = vector.extract_strided_slice %17 {offsets = [16, 0], sizes = [8, 32], strides = [1, 1]} : vector<64x32xf32> to vector<8x32xf32>
    %cst_33 = arith.constant dense<0.000000e+00> : vector<8x32xf32>
    %51 = tpu.matmul %38, %5, %cst_33 {dimension_numbers = #tpu.dot_dimension_numbers<[1], [0], [0], [1], [0, 0, 1, 1], [], []>} : vector<8x32xbf16>, vector<32x32xbf16>, vector<8x32xf32> -> vector<8x32xf32>
    %52 = arith.addf %50, %51 : vector<8x32xf32>
    %53 = math.tanh %52 : vector<8x32xf32>
    %54 = arith.truncf %53 : vector<8x32xf32> to vector<8x32xbf16>
    %cst_34 = arith.constant dense<0.000000e+00> : vector<8x32xf32>
    %55 = tpu.matmul %54, %3, %cst_34 {dimension_numbers = #tpu.dot_dimension_numbers<[1], [0], [0], [1], [0, 0, 1, 1], [], []>} : vector<8x32xbf16>, vector<32x32xbf16>, vector<8x32xf32> -> vector<8x32xf32>
    %56 = arith.addf %55, %11 : vector<8x32xf32>
    %57 = arith.truncf %44 : vector<8x32xf32> to vector<8x32xbf16>
    %cst_35 = arith.constant dense<0.000000e+00> : vector<8x32xf32>
    %58 = tpu.matmul %57, %7, %cst_35 {dimension_numbers = #tpu.dot_dimension_numbers<[1], [0], [0], [1], [0, 0, 1, 1], [], []>} : vector<8x32xbf16>, vector<32x32xbf16>, vector<8x32xf32> -> vector<8x32xf32>
    %59 = arith.addf %56, %58 : vector<8x32xf32>
    %60 = math.tanh %59 : vector<8x32xf32>
    %61 = arith.truncf %60 : vector<8x32xf32> to vector<8x32xbf16>
    %c2 = arith.constant 2 : index
    %c0_36 = arith.constant 0 : index
    %c0_37 = arith.constant 0 : index
    %62 = vector.load %arg4[%c2, %c0_36, %c0_37] : memref<8x32x128xbf16, #tpu.memory_space<vmem>>, vector<1x32x128xbf16>
    %63 = vector.shape_cast %62 : vector<1x32x128xbf16> to vector<32x128xbf16>
    %cst_38 = arith.constant dense<0.000000e+00> : vector<8x128xf32>
    %64 = tpu.matmul %61, %63, %cst_38 {dimension_numbers = #tpu.dot_dimension_numbers<[1], [0], [0], [1], [0, 0, 1, 1], [], []>} : vector<8x32xbf16>, vector<32x128xbf16>, vector<8x128xf32> -> vector<8x128xf32>
    %65 = arith.addf %49, %64 : vector<8x128xf32>
    %66 = vector.extract_strided_slice %17 {offsets = [24, 0], sizes = [8, 32], strides = [1, 1]} : vector<64x32xf32> to vector<8x32xf32>
    %cst_39 = arith.constant dense<0.000000e+00> : vector<8x32xf32>
    %67 = tpu.matmul %54, %5, %cst_39 {dimension_numbers = #tpu.dot_dimension_numbers<[1], [0], [0], [1], [0, 0, 1, 1], [], []>} : vector<8x32xbf16>, vector<32x32xbf16>, vector<8x32xf32> -> vector<8x32xf32>
    %68 = arith.addf %66, %67 : vector<8x32xf32>
    %69 = math.tanh %68 : vector<8x32xf32>
    %70 = arith.truncf %69 : vector<8x32xf32> to vector<8x32xbf16>
    %cst_40 = arith.constant dense<0.000000e+00> : vector<8x32xf32>
    %71 = tpu.matmul %70, %3, %cst_40 {dimension_numbers = #tpu.dot_dimension_numbers<[1], [0], [0], [1], [0, 0, 1, 1], [], []>} : vector<8x32xbf16>, vector<32x32xbf16>, vector<8x32xf32> -> vector<8x32xf32>
    %72 = arith.addf %71, %11 : vector<8x32xf32>
    %73 = arith.truncf %60 : vector<8x32xf32> to vector<8x32xbf16>
    %cst_41 = arith.constant dense<0.000000e+00> : vector<8x32xf32>
    %74 = tpu.matmul %73, %7, %cst_41 {dimension_numbers = #tpu.dot_dimension_numbers<[1], [0], [0], [1], [0, 0, 1, 1], [], []>} : vector<8x32xbf16>, vector<32x32xbf16>, vector<8x32xf32> -> vector<8x32xf32>
    %75 = arith.addf %72, %74 : vector<8x32xf32>
    %76 = math.tanh %75 : vector<8x32xf32>
    %77 = arith.truncf %76 : vector<8x32xf32> to vector<8x32xbf16>
    %c3 = arith.constant 3 : index
    %c0_42 = arith.constant 0 : index
    %c0_43 = arith.constant 0 : index
    %78 = vector.load %arg4[%c3, %c0_42, %c0_43] : memref<8x32x128xbf16, #tpu.memory_space<vmem>>, vector<1x32x128xbf16>
    %79 = vector.shape_cast %78 : vector<1x32x128xbf16> to vector<32x128xbf16>
    %cst_44 = arith.constant dense<0.000000e+00> : vector<8x128xf32>
    %80 = tpu.matmul %77, %79, %cst_44 {dimension_numbers = #tpu.dot_dimension_numbers<[1], [0], [0], [1], [0, 0, 1, 1], [], []>} : vector<8x32xbf16>, vector<32x128xbf16>, vector<8x128xf32> -> vector<8x128xf32>
    %81 = arith.addf %65, %80 : vector<8x128xf32>
    %82 = vector.extract_strided_slice %17 {offsets = [32, 0], sizes = [8, 32], strides = [1, 1]} : vector<64x32xf32> to vector<8x32xf32>
    %cst_45 = arith.constant dense<0.000000e+00> : vector<8x32xf32>
    %83 = tpu.matmul %70, %5, %cst_45 {dimension_numbers = #tpu.dot_dimension_numbers<[1], [0], [0], [1], [0, 0, 1, 1], [], []>} : vector<8x32xbf16>, vector<32x32xbf16>, vector<8x32xf32> -> vector<8x32xf32>
    %84 = arith.addf %82, %83 : vector<8x32xf32>
    %85 = math.tanh %84 : vector<8x32xf32>
    %86 = arith.truncf %85 : vector<8x32xf32> to vector<8x32xbf16>
    %cst_46 = arith.constant dense<0.000000e+00> : vector<8x32xf32>
    %87 = tpu.matmul %86, %3, %cst_46 {dimension_numbers = #tpu.dot_dimension_numbers<[1], [0], [0], [1], [0, 0, 1, 1], [], []>} : vector<8x32xbf16>, vector<32x32xbf16>, vector<8x32xf32> -> vector<8x32xf32>
    %88 = arith.addf %87, %11 : vector<8x32xf32>
    %89 = arith.truncf %76 : vector<8x32xf32> to vector<8x32xbf16>
    %cst_47 = arith.constant dense<0.000000e+00> : vector<8x32xf32>
    %90 = tpu.matmul %89, %7, %cst_47 {dimension_numbers = #tpu.dot_dimension_numbers<[1], [0], [0], [1], [0, 0, 1, 1], [], []>} : vector<8x32xbf16>, vector<32x32xbf16>, vector<8x32xf32> -> vector<8x32xf32>
    %91 = arith.addf %88, %90 : vector<8x32xf32>
    %92 = math.tanh %91 : vector<8x32xf32>
    %93 = arith.truncf %92 : vector<8x32xf32> to vector<8x32xbf16>
    %c4 = arith.constant 4 : index
    %c0_48 = arith.constant 0 : index
    %c0_49 = arith.constant 0 : index
    %94 = vector.load %arg4[%c4, %c0_48, %c0_49] : memref<8x32x128xbf16, #tpu.memory_space<vmem>>, vector<1x32x128xbf16>
    %95 = vector.shape_cast %94 : vector<1x32x128xbf16> to vector<32x128xbf16>
    %cst_50 = arith.constant dense<0.000000e+00> : vector<8x128xf32>
    %96 = tpu.matmul %93, %95, %cst_50 {dimension_numbers = #tpu.dot_dimension_numbers<[1], [0], [0], [1], [0, 0, 1, 1], [], []>} : vector<8x32xbf16>, vector<32x128xbf16>, vector<8x128xf32> -> vector<8x128xf32>
    %97 = arith.addf %81, %96 : vector<8x128xf32>
    %98 = vector.extract_strided_slice %17 {offsets = [40, 0], sizes = [8, 32], strides = [1, 1]} : vector<64x32xf32> to vector<8x32xf32>
    %cst_51 = arith.constant dense<0.000000e+00> : vector<8x32xf32>
    %99 = tpu.matmul %86, %5, %cst_51 {dimension_numbers = #tpu.dot_dimension_numbers<[1], [0], [0], [1], [0, 0, 1, 1], [], []>} : vector<8x32xbf16>, vector<32x32xbf16>, vector<8x32xf32> -> vector<8x32xf32>
    %100 = arith.addf %98, %99 : vector<8x32xf32>
    %101 = math.tanh %100 : vector<8x32xf32>
    %102 = arith.truncf %101 : vector<8x32xf32> to vector<8x32xbf16>
    %cst_52 = arith.constant dense<0.000000e+00> : vector<8x32xf32>
    %103 = tpu.matmul %102, %3, %cst_52 {dimension_numbers = #tpu.dot_dimension_numbers<[1], [0], [0], [1], [0, 0, 1, 1], [], []>} : vector<8x32xbf16>, vector<32x32xbf16>, vector<8x32xf32> -> vector<8x32xf32>
    %104 = arith.addf %103, %11 : vector<8x32xf32>
    %105 = arith.truncf %92 : vector<8x32xf32> to vector<8x32xbf16>
    %cst_53 = arith.constant dense<0.000000e+00> : vector<8x32xf32>
    %106 = tpu.matmul %105, %7, %cst_53 {dimension_numbers = #tpu.dot_dimension_numbers<[1], [0], [0], [1], [0, 0, 1, 1], [], []>} : vector<8x32xbf16>, vector<32x32xbf16>, vector<8x32xf32> -> vector<8x32xf32>
    %107 = arith.addf %104, %106 : vector<8x32xf32>
    %108 = math.tanh %107 : vector<8x32xf32>
    %109 = arith.truncf %108 : vector<8x32xf32> to vector<8x32xbf16>
    %c5 = arith.constant 5 : index
    %c0_54 = arith.constant 0 : index
    %c0_55 = arith.constant 0 : index
    %110 = vector.load %arg4[%c5, %c0_54, %c0_55] : memref<8x32x128xbf16, #tpu.memory_space<vmem>>, vector<1x32x128xbf16>
    %111 = vector.shape_cast %110 : vector<1x32x128xbf16> to vector<32x128xbf16>
    %cst_56 = arith.constant dense<0.000000e+00> : vector<8x128xf32>
    %112 = tpu.matmul %109, %111, %cst_56 {dimension_numbers = #tpu.dot_dimension_numbers<[1], [0], [0], [1], [0, 0, 1, 1], [], []>} : vector<8x32xbf16>, vector<32x128xbf16>, vector<8x128xf32> -> vector<8x128xf32>
    %113 = arith.addf %97, %112 : vector<8x128xf32>
    %114 = vector.extract_strided_slice %17 {offsets = [48, 0], sizes = [8, 32], strides = [1, 1]} : vector<64x32xf32> to vector<8x32xf32>
    %cst_57 = arith.constant dense<0.000000e+00> : vector<8x32xf32>
    %115 = tpu.matmul %102, %5, %cst_57 {dimension_numbers = #tpu.dot_dimension_numbers<[1], [0], [0], [1], [0, 0, 1, 1], [], []>} : vector<8x32xbf16>, vector<32x32xbf16>, vector<8x32xf32> -> vector<8x32xf32>
    %116 = arith.addf %114, %115 : vector<8x32xf32>
    %117 = math.tanh %116 : vector<8x32xf32>
    %118 = arith.truncf %117 : vector<8x32xf32> to vector<8x32xbf16>
    %cst_58 = arith.constant dense<0.000000e+00> : vector<8x32xf32>
    %119 = tpu.matmul %118, %3, %cst_58 {dimension_numbers = #tpu.dot_dimension_numbers<[1], [0], [0], [1], [0, 0, 1, 1], [], []>} : vector<8x32xbf16>, vector<32x32xbf16>, vector<8x32xf32> -> vector<8x32xf32>
    %120 = arith.addf %119, %11 : vector<8x32xf32>
    %121 = arith.truncf %108 : vector<8x32xf32> to vector<8x32xbf16>
    %cst_59 = arith.constant dense<0.000000e+00> : vector<8x32xf32>
    %122 = tpu.matmul %121, %7, %cst_59 {dimension_numbers = #tpu.dot_dimension_numbers<[1], [0], [0], [1], [0, 0, 1, 1], [], []>} : vector<8x32xbf16>, vector<32x32xbf16>, vector<8x32xf32> -> vector<8x32xf32>
    %123 = arith.addf %120, %122 : vector<8x32xf32>
    %124 = math.tanh %123 : vector<8x32xf32>
    %125 = arith.truncf %124 : vector<8x32xf32> to vector<8x32xbf16>
    %c6 = arith.constant 6 : index
    %c0_60 = arith.constant 0 : index
    %c0_61 = arith.constant 0 : index
    %126 = vector.load %arg4[%c6, %c0_60, %c0_61] : memref<8x32x128xbf16, #tpu.memory_space<vmem>>, vector<1x32x128xbf16>
    %127 = vector.shape_cast %126 : vector<1x32x128xbf16> to vector<32x128xbf16>
    %cst_62 = arith.constant dense<0.000000e+00> : vector<8x128xf32>
    %128 = tpu.matmul %125, %127, %cst_62 {dimension_numbers = #tpu.dot_dimension_numbers<[1], [0], [0], [1], [0, 0, 1, 1], [], []>} : vector<8x32xbf16>, vector<32x128xbf16>, vector<8x128xf32> -> vector<8x128xf32>
    %129 = arith.addf %113, %128 : vector<8x128xf32>
    %130 = vector.extract_strided_slice %17 {offsets = [56, 0], sizes = [8, 32], strides = [1, 1]} : vector<64x32xf32> to vector<8x32xf32>
    %cst_63 = arith.constant dense<0.000000e+00> : vector<8x32xf32>
    %131 = tpu.matmul %118, %5, %cst_63 {dimension_numbers = #tpu.dot_dimension_numbers<[1], [0], [0], [1], [0, 0, 1, 1], [], []>} : vector<8x32xbf16>, vector<32x32xbf16>, vector<8x32xf32> -> vector<8x32xf32>
    %132 = arith.addf %130, %131 : vector<8x32xf32>
    %133 = math.tanh %132 : vector<8x32xf32>
    %134 = arith.truncf %133 : vector<8x32xf32> to vector<8x32xbf16>
    %cst_64 = arith.constant dense<0.000000e+00> : vector<8x32xf32>
    %135 = tpu.matmul %134, %3, %cst_64 {dimension_numbers = #tpu.dot_dimension_numbers<[1], [0], [0], [1], [0, 0, 1, 1], [], []>} : vector<8x32xbf16>, vector<32x32xbf16>, vector<8x32xf32> -> vector<8x32xf32>
    %136 = arith.addf %135, %11 : vector<8x32xf32>
    %137 = arith.truncf %124 : vector<8x32xf32> to vector<8x32xbf16>
    %cst_65 = arith.constant dense<0.000000e+00> : vector<8x32xf32>
    %138 = tpu.matmul %137, %7, %cst_65 {dimension_numbers = #tpu.dot_dimension_numbers<[1], [0], [0], [1], [0, 0, 1, 1], [], []>} : vector<8x32xbf16>, vector<32x32xbf16>, vector<8x32xf32> -> vector<8x32xf32>
    %139 = arith.addf %136, %138 : vector<8x32xf32>
    %140 = math.tanh %139 : vector<8x32xf32>
    %141 = arith.truncf %140 : vector<8x32xf32> to vector<8x32xbf16>
    %c7 = arith.constant 7 : index
    %c0_66 = arith.constant 0 : index
    %c0_67 = arith.constant 0 : index
    %142 = vector.load %arg4[%c7, %c0_66, %c0_67] : memref<8x32x128xbf16, #tpu.memory_space<vmem>>, vector<1x32x128xbf16>
    %143 = vector.shape_cast %142 : vector<1x32x128xbf16> to vector<32x128xbf16>
    %cst_68 = arith.constant dense<0.000000e+00> : vector<8x128xf32>
    %144 = tpu.matmul %141, %143, %cst_68 {dimension_numbers = #tpu.dot_dimension_numbers<[1], [0], [0], [1], [0, 0, 1, 1], [], []>} : vector<8x32xbf16>, vector<32x128xbf16>, vector<8x128xf32> -> vector<8x128xf32>
    %145 = arith.addf %129, %144 : vector<8x128xf32>
    %c0_69 = arith.constant 0 : index
    %c0_70 = arith.constant 0 : index
    %146 = vector.load %arg5[%c0_69, %c0_70] : memref<1x128xf32, #tpu.memory_space<vmem>>, vector<1x128xf32>
    %147 = vector.broadcast %146 : vector<1x128xf32> to vector<8x128xf32>
    %148 = arith.addf %145, %147 : vector<8x128xf32>
    %c0_71 = arith.constant 0 : index
    %c0_72 = arith.constant 0 : index
    %149 = vector.load %arg6[%c0_71, %c0_72] : memref<8x128xf32, #tpu.memory_space<vmem>>, vector<8x128xf32>
    tpu.vector_store %arg6[%c0_71, %c0_72], %148 {strides = array<i32>} : memref<8x128xf32, #tpu.memory_space<vmem>>, vector<8x128xf32>,
    return
  }
}

</mosaic_0001>

<llo_original>
// kernel: rnn_forward.1
$region0: #{rnn_forward.1}
  #allocation0 [shape = 'u32[]', space=smem, size = 0x4, offset = 0x4, fixed_abs, tag = 'smem constant byte address 0x4 - core index']
  #allocation1 [shape = 'u32[72,128]{1,0:T(1,128)}', space=vmem, size = 0x9000, scoped, tag = 'internal scratch']
  %s0 = inlined_call_operand.vmem [shape: bf16[64,32], index: 0, kind: input, shape index: {}]
  %s1 = inlined_call_operand.vmem [shape: bf16[2,32,32], index: 1, kind: input, shape index: {}]
  %s2 = inlined_call_operand.vmem [shape: bf16[2,32,32], index: 2, kind: input, shape index: {}]
  %s3 = inlined_call_operand.vmem [shape: f32[2,1,32], index: 3, kind: input, shape index: {}]
  %s4 = inlined_call_operand.hbm [shape: bf16[8,32,128], index: 4, kind: input, shape index: {}]
  %s5 = inlined_call_operand.vmem [shape: f32[1,128], index: 5, kind: input, shape index: {}]
  %s6 = inlined_call_operand.vmem [shape: f32[8,128], index: 6, kind: output, shape index: {}]
  %s7 = sld [smem:[#allocation0]]
  $region38: #{rnn_forward.1} parent=0
    _
  %s9 = ssub.s32 1, %s7
  %s10 = scalar_select 0, %s9, %s7
  $region1: #{rnn_forward.1} parent=0
    #allocation2 [shape = 'u8[65536]{0}', space=vmem, size = 0x10000, scoped, tag = 'input window, operand 4, single buffered']
    #allocation3 [shape = 's32[1]{0}', space=sflag, size = 0x4, scoped, tag = 'scoped memory for rnn_forward.1']
    %11 = vsyncpa [#allocation3], 0
    // Predicated region
    $region2: #{rnn_forward.1} parent=1 // pred_check
      _
    $region3: #{rnn_forward.1} parent=1 // pred_check_branch
      %13 = sbr.rel (0) target = $region5
    $region4: #{rnn_forward.1} parent=1 // pred_region
      _
    $region5: #{rnn_forward.1} parent=1 // pred_fallthru
      _
    // Predicated region
    $region6: #{rnn_forward.1} parent=1 // pred_check
      _
    $region7: #{rnn_forward.1} parent=1 // pred_check_branch
      %15 = sbr.rel (0) target = $region9
    $region8: #{rnn_forward.1} parent=1 // pred_region
      _
    $region9: #{rnn_forward.1} parent=1 // pred_fallthru
      _
    // Predicated region
    $region10: #{rnn_forward.1} parent=1 // pred_check
      _
    $region11: #{rnn_forward.1} parent=1 // pred_check_branch
      %17 = sbr.rel (0) target = $region13
    $region12: #{rnn_forward.1} parent=1 // pred_region
      _
    $region13: #{rnn_forward.1} parent=1 // pred_fallthru
      _
    // Predicated region
    $region14: #{rnn_forward.1} parent=1 // pred_check
      _
    $region15: #{rnn_forward.1} parent=1 // pred_check_branch
      %19 = sbr.rel (0) target = $region17
    $region16: #{rnn_forward.1} parent=1 // pred_region
      _
    $region17: #{rnn_forward.1} parent=1 // pred_fallthru
      _
    // Predicated region
    $region18: #{rnn_forward.1} parent=1 // pred_check
      _
    $region19: #{rnn_forward.1} parent=1 // pred_check_branch
      %21 = sbr.rel (0) target = $region21
    $region20: #{rnn_forward.1} parent=1 // pred_region
      %23 = vsyncadd [#allocation3], 0
      %s24 = sshll.u32 %s4, 4
      %s25 = int_to_ptr.hbm [resolvable:$true] %s24
      %s26 = sshll.u32 [#allocation2], 4
      %s27 = int_to_ptr.vmem [resolvable:$true] %s26
      %32 = dma.hbm_to_vmem [thread:$0]  %s25, 2048, %s27, [#allocation3], 64, 64, 4
    $region21: #{rnn_forward.1} parent=1 // pred_fallthru
      _
    // Predicated region
    $region22: #{rnn_forward.1} parent=1 // pred_check
      _
    $region23: #{rnn_forward.1} parent=1 // pred_check_branch
      %34 = sbr.rel (0) target = $region25
    $region24: #{rnn_forward.1} parent=1 // pred_region
      _
    $region25: #{rnn_forward.1} parent=1 // pred_fallthru
      _
    // Predicated region
    $region26: #{rnn_forward.1} parent=1 // pred_check
      _
    $region27: #{rnn_forward.1} parent=1 // pred_check_branch
      %36 = sbr.rel (0) target = $region29
    $region28: #{rnn_forward.1} parent=1 // pred_region
      %38 = dma.done [#allocation3], 2048
    $region29: #{rnn_forward.1} parent=1 // pred_fallthru
      _
    %v40 = vld [vmem:[%s1] sm:$0xf]
    %v41 = vld [vmem:[%s1 + $0x4] sm:$0xf]
    %v42 = vld [vmem:[%s1 + $0x8] sm:$0xf]
    %v43 = vld [vmem:[%s1 + $0xc] sm:$0xf]
    %s44 = scalar_lea.vmem %s1, 16
    %v45 = vld [vmem:[%s44] sm:$0xf]
    %v46 = vld [vmem:[%s44 + $0x4] sm:$0xf]
    %v47 = vld [vmem:[%s44 + $0x8] sm:$0xf]
    %v48 = vld [vmem:[%s44 + $0xc] sm:$0xf]
    %v49 = vld [vmem:[%s2] sm:$0xf]
    %v50 = vld [vmem:[%s2 + $0x4] sm:$0xf]
    %v51 = vld [vmem:[%s2 + $0x8] sm:$0xf]
    %v52 = vld [vmem:[%s2 + $0xc] sm:$0xf]
    %s53 = scalar_lea.vmem %s2, 16
    %v54 = vld [vmem:[%s53] sm:$0xf]
    %v55 = vld [vmem:[%s53 + $0x4] sm:$0xf]
    %v56 = vld [vmem:[%s53 + $0x8] sm:$0xf]
    %v57 = vld [vmem:[%s53 + $0xc] sm:$0xf]
    %s58 = scalar_lea.vmem %s3, 1
    %v59 = vld [vmem:[%s58] sm:$0x1]
    %v61 = vperm.slane %v59, 0
    %v63 = vld [vmem:[%s0] sm:$0xf]
    %v64 = vld [vmem:[%s0 + $0x4] sm:$0xf]
    %v65 = vld [vmem:[%s0 + $0x8] sm:$0xf]
    %v66 = vld [vmem:[%s0 + $0xc] sm:$0xf]
    %v67 = vld [vmem:[%s0 + $0x10] sm:$0xf]
    %v68 = vld [vmem:[%s0 + $0x14] sm:$0xf]
    %v69 = vld [vmem:[%s0 + $0x18] sm:$0xf]
    %v70 = vld [vmem:[%s0 + $0x1c] sm:$0xf]
    %v71 = vld [vmem:[%s3] sm:$0x1]
    %v73 = vperm.slane %v71, 0
    %v83 = vunpack.c.l.b16 %v63
    %v84 = vunpack.c.l.b16 %v64
    %v85 = vunpack.c.l.b16 %v65
    %v86 = vunpack.c.l.b16 %v66
    %v87 = vunpack.c.l.b16 %v67
    %v88 = vunpack.c.l.b16 %v68
    %v89 = vunpack.c.l.b16 %v69
    %v90 = vunpack.c.l.b16 %v70
    %v91 = vpack.c.b16 %v84, %v83
    %v92 = vpack.c.b16 %v86, %v85
    %v93 = vpack.c.b16 %v88, %v87
    %v94 = vpack.c.b16 %v90, %v89
    %v99 = vunpack.c.l.b16 %v40
    %v100 = vunpack.c.l.b16 %v41
    %v101 = vunpack.c.l.b16 %v42
    %v102 = vunpack.c.l.b16 %v43
    %v103 = vpack.c.b16 %v100, %v99
    %v104 = vpack.c.b16 %v102, %v101
    %vm107 = vcmask 261120
    %v109 = vsel %vm107, %v91, 0
    %v112 = vsel %vm107, %v92, 0
    %v115 = vsel %vm107, %v93, 0
    %v118 = vsel %vm107, %v94, 0
    %120 = vmatpush.bf16.msra.mxu0 0
    %121 = vmatpush.bf16.msra.mxu0 0
    %122 = vmatpush.bf16.msra.mxu0 0
    %123 = vmatpush.bf16.msra.mxu0 0
    %124 = vmatpush.bf16.msra.mxu0 0
    %125 = vmatpush.bf16.msra.mxu0 0
    %126 = vmatpush.bf16.msra.mxu0 %v104
    %127 = vmatpush.bf16.msra.mxu0 %v103
    %128 = vmatmul.bf16.gmra.mxu0 %v109
    %v129 = vpop.f32.mrf.mxu0
    %v130 = vadd.f32 %v73, %v129
    %v131 = vpop.f32.mrf.mxu0
    %v132 = vadd.f32 %v73, %v131
    %133 = vmatmul.bf16.gmra.mxu0 %v112
    %v134 = vpop.f32.mrf.mxu0
    %v135 = vadd.f32 %v73, %v134
    %v136 = vpop.f32.mrf.mxu0
    %v137 = vadd.f32 %v73, %v136
    %138 = vmatmul.bf16.gmra.mxu0 %v115
    %v139 = vpop.f32.mrf.mxu0
    %v140 = vadd.f32 %v73, %v139
    %v141 = vpop.f32.mrf.mxu0
    %v142 = vadd.f32 %v73, %v141
    %143 = vmatmul.bf16.gmra.mxu0 %v118
    %v144 = vpop.f32.mrf.mxu0
    %v145 = vadd.f32 %v73, %v144
    %v146 = vpop.f32.mrf.mxu0
    %v147 = vadd.f32 %v73, %v146
    %148 = vdwg.mxu0
    %v149 = vtanh.pop %v130
    %v150 = vpack.c.bf16 %v149, %v149
    %v155 = vunpack.c.l.b16 %v45
    %v156 = vunpack.c.l.b16 %v46
    %v157 = vunpack.c.l.b16 %v47
    %v158 = vunpack.c.l.b16 %v48
    %v159 = vpack.c.b16 %v156, %v155
    %v160 = vpack.c.b16 %v158, %v157
    %v164 = vsel %vm107, %v150, 0
    %166 = vmatpush.bf16.msra.mxu0 0
    %167 = vmatpush.bf16.msra.mxu0 0
    %168 = vmatpush.bf16.msra.mxu0 0
    %169 = vmatpush.bf16.msra.mxu0 0
    %170 = vmatpush.bf16.msra.mxu0 0
    %171 = vmatpush.bf16.msra.mxu0 0
    %172 = vmatpush.bf16.msra.mxu0 %v160
    %173 = vmatpush.bf16.msra.mxu0 %v159
    %174 = vmatmul.bf16.gmra.mxu0 %v164
    %v175 = vpop.f32.mrf.mxu0
    %v176 = vadd.f32 %v61, %v175
    %v177 = vpop.f32.mrf.mxu0
    %178 = vdwg.mxu0
    %v183 = vunpack.c.l.b16 %v54
    %v184 = vunpack.c.l.b16 %v55
    %v185 = vunpack.c.l.b16 %v56
    %v186 = vunpack.c.l.b16 %v57
    %v187 = vpack.c.b16 %v184, %v183
    %v188 = vpack.c.b16 %v186, %v185
    %v192 = vsel %vm107, 0, 0
    %194 = vmatpush.bf16.msra.mxu0 0
    %195 = vmatpush.bf16.msra.mxu0 0
    %196 = vmatpush.bf16.msra.mxu0 0
    %197 = vmatpush.bf16.msra.mxu0 0
    %198 = vmatpush.bf16.msra.mxu0 0
    %199 = vmatpush.bf16.msra.mxu0 0
    %200 = vmatpush.bf16.msra.mxu0 %v188
    %201 = vmatpush.bf16.msra.mxu0 %v187
    %202 = vmatmul.bf16.gmra.mxu0 %v192
    %v203 = vpop.f32.mrf.mxu0
    %v204 = vadd.f32 0.0, %v203
    %v205 = vpop.f32.mrf.mxu0
    %206 = vdwg.mxu0
    %v207 = vadd.f32 %v176, %v204
    %v208 = vtanh.pop %v207
    %v209 = vpack.c.bf16 %v208, %v208
    %v210 = vld [vmem:[#allocation2] sm:$0xf]
    %v211 = vld [vmem:[#allocation2 + $0x4] sm:$0xf]
    %v212 = vld [vmem:[#allocation2 + $0x8] sm:$0xf]
    %v213 = vld [vmem:[#allocation2 + $0xc] sm:$0xf]
    %v218 = vunpack.c.l.b16 %v49
    %v219 = vunpack.c.l.b16 %v50
    %v220 = vunpack.c.l.b16 %v51
    %v221 = vunpack.c.l.b16 %v52
    %v222 = vpack.c.b16 %v219, %v218
    %v223 = vpack.c.b16 %v221, %v220
    %226 = vmatpush.bf16.msra.mxu0 0
    %227 = vmatpush.bf16.msra.mxu0 0
    %228 = vmatpush.bf16.msra.mxu0 0
    %229 = vmatpush.bf16.msra.mxu0 0
    %230 = vmatpush.bf16.msra.mxu0 0
    %231 = vmatpush.bf16.msra.mxu0 0
    %232 = vmatpush.bf16.msra.mxu0 %v223
    %233 = vmatpush.bf16.msra.mxu0 %v222
    %234 = vmatmul.bf16.gmra.mxu0 %v164
    %v235 = vpop.f32.mrf.mxu0
    %v236 = vadd.f32 0.0, %v235
    %v237 = vpop.f32.mrf.mxu0
    %238 = vdwg.mxu0
    %v239 = vadd.f32 %v132, %v236
    %v240 = vtanh.pop %v239
    %v241 = vpack.c.bf16 %v240, %v240
    %v243 = vsel %vm107, %v241, 0
    %245 = vmatpush.bf16.msra.mxu0 0
    %246 = vmatpush.bf16.msra.mxu0 0
    %247 = vmatpush.bf16.msra.mxu0 0
    %248 = vmatpush.bf16.msra.mxu0 0
    %249 = vmatpush.bf16.msra.mxu0 0
    %250 = vmatpush.bf16.msra.mxu0 0
    %251 = vmatpush.bf16.msra.mxu0 %v160
    %252 = vmatpush.bf16.msra.mxu0 %v159
    %253 = vmatmul.bf16.gmra.mxu0 %v243
    %v254 = vpop.f32.mrf.mxu0
    %v255 = vadd.f32 %v61, %v254
    %v256 = vpop.f32.mrf.mxu0
    %257 = vdwg.mxu0
    %v259 = vsel %vm107, %v209, 0
    %261 = vmatpush.bf16.msra.mxu0 0
    %262 = vmatpush.bf16.msra.mxu0 0
    %263 = vmatpush.bf16.msra.mxu0 0
    %264 = vmatpush.bf16.msra.mxu0 0
    %265 = vmatpush.bf16.msra.mxu0 0
    %266 = vmatpush.bf16.msra.mxu0 0
    %267 = vmatpush.bf16.msra.mxu0 %v188
    %268 = vmatpush.bf16.msra.mxu0 %v187
    %269 = vmatmul.bf16.gmra.mxu0 %v259
    %v270 = vpop.f32.mrf.mxu0
    %v271 = vadd.f32 0.0, %v270
    %v272 = vpop.f32.mrf.mxu0
    %273 = vdwg.mxu0
    %v274 = vadd.f32 %v255, %v271
    %v275 = vtanh.pop %v274
    %v276 = vpack.c.bf16 %v275, %v275
    %s277 = scalar_lea.vmem [#allocation2], 16
    %v278 = vld [vmem:[%s277] sm:$0xf]
    %v279 = vld [vmem:[%s277 + $0x4] sm:$0xf]
    %v280 = vld [vmem:[%s277 + $0x8] sm:$0xf]
    %v281 = vld [vmem:[%s277 + $0xc] sm:$0xf]
    %v286 = vunpack.c.l.b16 %v278
    %v287 = vunpack.c.l.b16 %v279
    %v288 = vunpack.c.l.b16 %v280
    %v289 = vunpack.c.l.b16 %v281
    %v290 = vpack.c.b16 %v287, %v286
    %v291 = vpack.c.b16 %v289, %v288
    %v295 = vsel %vm107, %v276, 0
    %297 = vmatpush.bf16.msra.mxu0 0
    %298 = vmatpush.bf16.msra.mxu0 0
    %299 = vmatpush.bf16.msra.mxu0 0
    %300 = vmatpush.bf16.msra.mxu0 0
    %301 = vmatpush.bf16.msra.mxu0 0
    %302 = vmatpush.bf16.msra.mxu0 0
    %303 = vmatpush.bf16.msra.mxu0 %v291
    %304 = vmatpush.bf16.msra.mxu0 %v290
    %305 = vmatmul.bf16.gmra.mxu0 %v295
    %v306 = vpop.f32.mrf.mxu0
    %v307 = vadd.f32 0.0, %v306
    %v308 = vpop.f32.mrf.mxu0
    %309 = vdwg.mxu0
    %v314 = vunpack.c.l.b16 %v210
    %v315 = vunpack.c.l.b16 %v211
    %v316 = vunpack.c.l.b16 %v212
    %v317 = vunpack.c.l.b16 %v213
    %v318 = vpack.c.b16 %v315, %v314
    %v319 = vpack.c.b16 %v317, %v316
    %322 = vmatpush.bf16.msra.mxu0 0
    %323 = vmatpush.bf16.msra.mxu0 0
    %324 = vmatpush.bf16.msra.mxu0 0
    %325 = vmatpush.bf16.msra.mxu0 0
    %326 = vmatpush.bf16.msra.mxu0 0
    %327 = vmatpush.bf16.msra.mxu0 0
    %328 = vmatpush.bf16.msra.mxu0 %v319
    %329 = vmatpush.bf16.msra.mxu0 %v318
    %330 = vmatmul.bf16.gmra.mxu0 %v259
    %v331 = vpop.f32.mrf.mxu0
    %v332 = vadd.f32 %v307, %v331
    %v333 = vpop.f32.mrf.mxu0
    %334 = vdwg.mxu0
    %335 = vmatpush.bf16.msra.mxu0 0
    %336 = vmatpush.bf16.msra.mxu0 0
    %337 = vmatpush.bf16.msra.mxu0 0
    %338 = vmatpush.bf16.msra.mxu0 0
    %339 = vmatpush.bf16.msra.mxu0 0
    %340 = vmatpush.bf16.msra.mxu0 0
    %341 = vmatpush.bf16.msra.mxu0 %v223
    %342 = vmatpush.bf16.msra.mxu0 %v222
    %343 = vmatmul.bf16.gmra.mxu0 %v243
    %v344 = vpop.f32.mrf.mxu0
    %v345 = vadd.f32 0.0, %v344
    %v346 = vpop.f32.mrf.mxu0
    %347 = vdwg.mxu0
    %v348 = vadd.f32 %v135, %v345
    %v349 = vtanh.pop %v348
    %v350 = vpack.c.bf16 %v349, %v349
    %v352 = vsel %vm107, %v350, 0
    %354 = vmatpush.bf16.msra.mxu0 0
    %355 = vmatpush.bf16.msra.mxu0 0
    %356 = vmatpush.bf16.msra.mxu0 0
    %357 = vmatpush.bf16.msra.mxu0 0
    %358 = vmatpush.bf16.msra.mxu0 0
    %359 = vmatpush.bf16.msra.mxu0 0
    %360 = vmatpush.bf16.msra.mxu0 %v160
    %361 = vmatpush.bf16.msra.mxu0 %v159
    %362 = vmatmul.bf16.gmra.mxu0 %v352
    %v363 = vpop.f32.mrf.mxu0
    %v364 = vadd.f32 %v61, %v363
    %v365 = vpop.f32.mrf.mxu0
    %366 = vdwg.mxu0
    %367 = vmatpush.bf16.msra.mxu0 0
    %368 = vmatpush.bf16.msra.mxu0 0
    %369 = vmatpush.bf16.msra.mxu0 0
    %370 = vmatpush.bf16.msra.mxu0 0
    %371 = vmatpush.bf16.msra.mxu0 0
    %372 = vmatpush.bf16.msra.mxu0 0
    %373 = vmatpush.bf16.msra.mxu0 %v188
    %374 = vmatpush.bf16.msra.mxu0 %v187
    %375 = vmatmul.bf16.gmra.mxu0 %v295
    %v376 = vpop.f32.mrf.mxu0
    %v377 = vadd.f32 0.0, %v376
    %v378 = vpop.f32.mrf.mxu0
    %379 = vdwg.mxu0
    %v380 = vadd.f32 %v364, %v377
    %v381 = vtanh.pop %v380
    %v382 = vpack.c.bf16 %v381, %v381
    %s383 = scalar_lea.vmem [#allocation2], 32
    %v384 = vld [vmem:[%s383] sm:$0xf]
    %v385 = vld [vmem:[%s383 + $0x4] sm:$0xf]
    %v386 = vld [vmem:[%s383 + $0x8] sm:$0xf]
    %v387 = vld [vmem:[%s383 + $0xc] sm:$0xf]
    %v392 = vunpack.c.l.b16 %v384
    %v393 = vunpack.c.l.b16 %v385
    %v394 = vunpack.c.l.b16 %v386
    %v395 = vunpack.c.l.b16 %v387
    %v396 = vpack.c.b16 %v393, %v392
    %v397 = vpack.c.b16 %v395, %v394
    %v401 = vsel %vm107, %v382, 0
    %403 = vmatpush.bf16.msra.mxu0 0
    %404 = vmatpush.bf16.msra.mxu0 0
    %405 = vmatpush.bf16.msra.mxu0 0
    %406 = vmatpush.bf16.msra.mxu0 0
    %407 = vmatpush.bf16.msra.mxu0 0
    %408 = vmatpush.bf16.msra.mxu0 0
    %409 = vmatpush.bf16.msra.mxu0 %v397
    %410 = vmatpush.bf16.msra.mxu0 %v396
    %411 = vmatmul.bf16.gmra.mxu0 %v401
    %v412 = vpop.f32.mrf.mxu0
    %v413 = vadd.f32 0.0, %v412
    %v414 = vpop.f32.mrf.mxu0
    %415 = vdwg.mxu0
    %v416 = vadd.f32 %v332, %v413
    %417 = vmatpush.bf16.msra.mxu0 0
    %418 = vmatpush.bf16.msra.mxu0 0
    %419 = vmatpush.bf16.msra.mxu0 0
    %420 = vmatpush.bf16.msra.mxu0 0
    %421 = vmatpush.bf16.msra.mxu0 0
    %422 = vmatpush.bf16.msra.mxu0 0
    %423 = vmatpush.bf16.msra.mxu0 %v223
    %424 = vmatpush.bf16.msra.mxu0 %v222
    %425 = vmatmul.bf16.gmra.mxu0 %v352
    %v426 = vpop.f32.mrf.mxu0
    %v427 = vadd.f32 0.0, %v426
    %v428 = vpop.f32.mrf.mxu0
    %429 = vdwg.mxu0
    %v430 = vadd.f32 %v137, %v427
    %v431 = vtanh.pop %v430
    %v432 = vpack.c.bf16 %v431, %v431
    %v434 = vsel %vm107, %v432, 0
    %436 = vmatpush.bf16.msra.mxu0 0
    %437 = vmatpush.bf16.msra.mxu0 0
    %438 = vmatpush.bf16.msra.mxu0 0
    %439 = vmatpush.bf16.msra.mxu0 0
    %440 = vmatpush.bf16.msra.mxu0 0
    %441 = vmatpush.bf16.msra.mxu0 0
    %442 = vmatpush.bf16.msra.mxu0 %v160
    %443 = vmatpush.bf16.msra.mxu0 %v159
    %444 = vmatmul.bf16.gmra.mxu0 %v434
    %v445 = vpop.f32.mrf.mxu0
    %v446 = vadd.f32 %v61, %v445
    %v447 = vpop.f32.mrf.mxu0
    %448 = vdwg.mxu0
    %449 = vmatpush.bf16.msra.mxu0 0
    %450 = vmatpush.bf16.msra.mxu0 0
    %451 = vmatpush.bf16.msra.mxu0 0
    %452 = vmatpush.bf16.msra.mxu0 0
    %453 = vmatpush.bf16.msra.mxu0 0
    %454 = vmatpush.bf16.msra.mxu0 0
    %455 = vmatpush.bf16.msra.mxu0 %v188
    %456 = vmatpush.bf16.msra.mxu0 %v187
    %457 = vmatmul.bf16.gmra.mxu0 %v401
    %v458 = vpop.f32.mrf.mxu0
    %v459 = vadd.f32 0.0, %v458
    %v460 = vpop.f32.mrf.mxu0
    %461 = vdwg.mxu0
    %v462 = vadd.f32 %v446, %v459
    %v463 = vtanh.pop %v462
    %v464 = vpack.c.bf16 %v463, %v463
    %s465 = scalar_lea.vmem [#allocation2], 48
    %v466 = vld [vmem:[%s465] sm:$0xf]
    %v467 = vld [vmem:[%s465 + $0x4] sm:$0xf]
    %v468 = vld [vmem:[%s465 + $0x8] sm:$0xf]
    %v469 = vld [vmem:[%s465 + $0xc] sm:$0xf]
    %v474 = vunpack.c.l.b16 %v466
    %v475 = vunpack.c.l.b16 %v467
    %v476 = vunpack.c.l.b16 %v468
    %v477 = vunpack.c.l.b16 %v469
    %v478 = vpack.c.b16 %v475, %v474
    %v479 = vpack.c.b16 %v477, %v476
    %v483 = vsel %vm107, %v464, 0
    %485 = vmatpush.bf16.msra.mxu0 0
    %486 = vmatpush.bf16.msra.mxu0 0
    %487 = vmatpush.bf16.msra.mxu0 0
    %488 = vmatpush.bf16.msra.mxu0 0
    %489 = vmatpush.bf16.msra.mxu0 0
    %490 = vmatpush.bf16.msra.mxu0 0
    %491 = vmatpush.bf16.msra.mxu0 %v479
    %492 = vmatpush.bf16.msra.mxu0 %v478
    %493 = vmatmul.bf16.gmra.mxu0 %v483
    %v494 = vpop.f32.mrf.mxu0
    %v495 = vadd.f32 0.0, %v494
    %v496 = vpop.f32.mrf.mxu0
    %497 = vdwg.mxu0
    %v498 = vadd.f32 %v416, %v495
    %499 = vmatpush.bf16.msra.mxu0 0
    %500 = vmatpush.bf16.msra.mxu0 0
    %501 = vmatpush.bf16.msra.mxu0 0
    %502 = vmatpush.bf16.msra.mxu0 0
    %503 = vmatpush.bf16.msra.mxu0 0
    %504 = vmatpush.bf16.msra.mxu0 0
    %505 = vmatpush.bf16.msra.mxu0 %v223
    %506 = vmatpush.bf16.msra.mxu0 %v222
    %507 = vmatmul.bf16.gmra.mxu0 %v434
    %v508 = vpop.f32.mrf.mxu0
    %v509 = vadd.f32 0.0, %v508
    %v510 = vpop.f32.mrf.mxu0
    %511 = vdwg.mxu0
    %v512 = vadd.f32 %v140, %v509
    %v513 = vtanh.pop %v512
    %v514 = vpack.c.bf16 %v513, %v513
    %v516 = vsel %vm107, %v514, 0
    %518 = vmatpush.bf16.msra.mxu0 0
    %519 = vmatpush.bf16.msra.mxu0 0
    %520 = vmatpush.bf16.msra.mxu0 0
    %521 = vmatpush.bf16.msra.mxu0 0
    %522 = vmatpush.bf16.msra.mxu0 0
    %523 = vmatpush.bf16.msra.mxu0 0
    %524 = vmatpush.bf16.msra.mxu0 %v160
    %525 = vmatpush.bf16.msra.mxu0 %v159
    %526 = vmatmul.bf16.gmra.mxu0 %v516
    %v527 = vpop.f32.mrf.mxu0
    %v528 = vadd.f32 %v61, %v527
    %v529 = vpop.f32.mrf.mxu0
    %530 = vdwg.mxu0
    %531 = vmatpush.bf16.msra.mxu0 0
    %532 = vmatpush.bf16.msra.mxu0 0
    %533 = vmatpush.bf16.msra.mxu0 0
    %534 = vmatpush.bf16.msra.mxu0 0
    %535 = vmatpush.bf16.msra.mxu0 0
    %536 = vmatpush.bf16.msra.mxu0 0
    %537 = vmatpush.bf16.msra.mxu0 %v188
    %538 = vmatpush.bf16.msra.mxu0 %v187
    %539 = vmatmul.bf16.gmra.mxu0 %v483
    %v540 = vpop.f32.mrf.mxu0
    %v541 = vadd.f32 0.0, %v540
    %v542 = vpop.f32.mrf.mxu0
    %543 = vdwg.mxu0
    %v544 = vadd.f32 %v528, %v541
    %v545 = vtanh.pop %v544
    %v546 = vpack.c.bf16 %v545, %v545
    %s547 = scalar_lea.vmem [#allocation2], 64
    %v548 = vld [vmem:[%s547] sm:$0xf]
    %v549 = vld [vmem:[%s547 + $0x4] sm:$0xf]
    %v550 = vld [vmem:[%s547 + $0x8] sm:$0xf]
    %v551 = vld [vmem:[%s547 + $0xc] sm:$0xf]
    %v556 = vunpack.c.l.b16 %v548
    %v557 = vunpack.c.l.b16 %v549
    %v558 = vunpack.c.l.b16 %v550
    %v559 = vunpack.c.l.b16 %v551
    %v560 = vpack.c.b16 %v557, %v556
    %v561 = vpack.c.b16 %v559, %v558
    %v565 = vsel %vm107, %v546, 0
    %567 = vmatpush.bf16.msra.mxu0 0
    %568 = vmatpush.bf16.msra.mxu0 0
    %569 = vmatpush.bf16.msra.mxu0 0
    %570 = vmatpush.bf16.msra.mxu0 0
    %571 = vmatpush.bf16.msra.mxu0 0
    %572 = vmatpush.bf16.msra.mxu0 0
    %573 = vmatpush.bf16.msra.mxu0 %v561
    %574 = vmatpush.bf16.msra.mxu0 %v560
    %575 = vmatmul.bf16.gmra.mxu0 %v565
    %v576 = vpop.f32.mrf.mxu0
    %v577 = vadd.f32 0.0, %v576
    %v578 = vpop.f32.mrf.mxu0
    %579 = vdwg.mxu0
    %v580 = vadd.f32 %v498, %v577
    %581 = vmatpush.bf16.msra.mxu0 0
    %582 = vmatpush.bf16.msra.mxu0 0
    %583 = vmatpush.bf16.msra.mxu0 0
    %584 = vmatpush.bf16.msra.mxu0 0
    %585 = vmatpush.bf16.msra.mxu0 0
    %586 = vmatpush.bf16.msra.mxu0 0
    %587 = vmatpush.bf16.msra.mxu0 %v223
    %588 = vmatpush.bf16.msra.mxu0 %v222
    %589 = vmatmul.bf16.gmra.mxu0 %v516
    %v590 = vpop.f32.mrf.mxu0
    %v591 = vadd.f32 0.0, %v590
    %v592 = vpop.f32.mrf.mxu0
    %593 = vdwg.mxu0
    %v594 = vadd.f32 %v142, %v591
    %v595 = vtanh.pop %v594
    %v596 = vpack.c.bf16 %v595, %v595
    %v598 = vsel %vm107, %v596, 0
    %600 = vmatpush.bf16.msra.mxu0 0
    %601 = vmatpush.bf16.msra.mxu0 0
    %602 = vmatpush.bf16.msra.mxu0 0
    %603 = vmatpush.bf16.msra.mxu0 0
    %604 = vmatpush.bf16.msra.mxu0 0
    %605 = vmatpush.bf16.msra.mxu0 0
    %606 = vmatpush.bf16.msra.mxu0 %v160
    %607 = vmatpush.bf16.msra.mxu0 %v159
    %608 = vmatmul.bf16.gmra.mxu0 %v598
    %v609 = vpop.f32.mrf.mxu0
    %v610 = vadd.f32 %v61, %v609
    %v611 = vpop.f32.mrf.mxu0
    %612 = vdwg.mxu0
    %613 = vmatpush.bf16.msra.mxu0 0
    %614 = vmatpush.bf16.msra.mxu0 0
    %615 = vmatpush.bf16.msra.mxu0 0
    %616 = vmatpush.bf16.msra.mxu0 0
    %617 = vmatpush.bf16.msra.mxu0 0
    %618 = vmatpush.bf16.msra.mxu0 0
    %619 = vmatpush.bf16.msra.mxu0 %v188
    %620 = vmatpush.bf16.msra.mxu0 %v187
    %621 = vmatmul.bf16.gmra.mxu0 %v565
    %v622 = vpop.f32.mrf.mxu0
    %v623 = vadd.f32 0.0, %v622
    %v624 = vpop.f32.mrf.mxu0
    %625 = vdwg.mxu0
    %v626 = vadd.f32 %v610, %v623
    %v627 = vtanh.pop %v626
    %v628 = vpack.c.bf16 %v627, %v627
    %s629 = scalar_lea.vmem [#allocation2], 80
    %v630 = vld [vmem:[%s629] sm:$0xf]
    %v631 = vld [vmem:[%s629 + $0x4] sm:$0xf]
    %v632 = vld [vmem:[%s629 + $0x8] sm:$0xf]
    %v633 = vld [vmem:[%s629 + $0xc] sm:$0xf]
    %v638 = vunpack.c.l.b16 %v630
    %v639 = vunpack.c.l.b16 %v631
    %v640 = vunpack.c.l.b16 %v632
    %v641 = vunpack.c.l.b16 %v633
    %v642 = vpack.c.b16 %v639, %v638
    %v643 = vpack.c.b16 %v641, %v640
    %v647 = vsel %vm107, %v628, 0
    %649 = vmatpush.bf16.msra.mxu0 0
    %650 = vmatpush.bf16.msra.mxu0 0
    %651 = vmatpush.bf16.msra.mxu0 0
    %652 = vmatpush.bf16.msra.mxu0 0
    %653 = vmatpush.bf16.msra.mxu0 0
    %654 = vmatpush.bf16.msra.mxu0 0
    %655 = vmatpush.bf16.msra.mxu0 %v643
    %656 = vmatpush.bf16.msra.mxu0 %v642
    %657 = vmatmul.bf16.gmra.mxu0 %v647
    %v658 = vpop.f32.mrf.mxu0
    %v659 = vadd.f32 0.0, %v658
    %v660 = vpop.f32.mrf.mxu0
    %661 = vdwg.mxu0
    %v662 = vadd.f32 %v580, %v659
    %663 = vmatpush.bf16.msra.mxu0 0
    %664 = vmatpush.bf16.msra.mxu0 0
    %665 = vmatpush.bf16.msra.mxu0 0
    %666 = vmatpush.bf16.msra.mxu0 0
    %667 = vmatpush.bf16.msra.mxu0 0
    %668 = vmatpush.bf16.msra.mxu0 0
    %669 = vmatpush.bf16.msra.mxu0 %v223
    %670 = vmatpush.bf16.msra.mxu0 %v222
    %671 = vmatmul.bf16.gmra.mxu0 %v598
    %v672 = vpop.f32.mrf.mxu0
    %v673 = vadd.f32 0.0, %v672
    %v674 = vpop.f32.mrf.mxu0
    %675 = vdwg.mxu0
    %v676 = vadd.f32 %v145, %v673
    %v677 = vtanh.pop %v676
    %v678 = vpack.c.bf16 %v677, %v677
    %v680 = vsel %vm107, %v678, 0
    %682 = vmatpush.bf16.msra.mxu0 0
    %683 = vmatpush.bf16.msra.mxu0 0
    %684 = vmatpush.bf16.msra.mxu0 0
    %685 = vmatpush.bf16.msra.mxu0 0
    %686 = vmatpush.bf16.msra.mxu0 0
    %687 = vmatpush.bf16.msra.mxu0 0
    %688 = vmatpush.bf16.msra.mxu0 %v160
    %689 = vmatpush.bf16.msra.mxu0 %v159
    %690 = vmatmul.bf16.gmra.mxu0 %v680
    %v691 = vpop.f32.mrf.mxu0
    %v692 = vadd.f32 %v61, %v691
    %v693 = vpop.f32.mrf.mxu0
    %694 = vdwg.mxu0
    %695 = vmatpush.bf16.msra.mxu0 0
    %696 = vmatpush.bf16.msra.mxu0 0
    %697 = vmatpush.bf16.msra.mxu0 0
    %698 = vmatpush.bf16.msra.mxu0 0
    %699 = vmatpush.bf16.msra.mxu0 0
    %700 = vmatpush.bf16.msra.mxu0 0
    %701 = vmatpush.bf16.msra.mxu0 %v188
    %702 = vmatpush.bf16.msra.mxu0 %v187
    %703 = vmatmul.bf16.gmra.mxu0 %v647
    %v704 = vpop.f32.mrf.mxu0
    %v705 = vadd.f32 0.0, %v704
    %v706 = vpop.f32.mrf.mxu0
    %707 = vdwg.mxu0
    %v708 = vadd.f32 %v692, %v705
    %v709 = vtanh.pop %v708
    %v710 = vpack.c.bf16 %v709, %v709
    %s711 = scalar_lea.vmem [#allocation2], 96
    %v712 = vld [vmem:[%s711] sm:$0xf]
    %v713 = vld [vmem:[%s711 + $0x4] sm:$0xf]
    %v714 = vld [vmem:[%s711 + $0x8] sm:$0xf]
    %v715 = vld [vmem:[%s711 + $0xc] sm:$0xf]
    %v720 = vunpack.c.l.b16 %v712
    %v721 = vunpack.c.l.b16 %v713
    %v722 = vunpack.c.l.b16 %v714
    %v723 = vunpack.c.l.b16 %v715
    %v724 = vpack.c.b16 %v721, %v720
    %v725 = vpack.c.b16 %v723, %v722
    %v729 = vsel %vm107, %v710, 0
    %731 = vmatpush.bf16.msra.mxu0 0
    %732 = vmatpush.bf16.msra.mxu0 0
    %733 = vmatpush.bf16.msra.mxu0 0
    %734 = vmatpush.bf16.msra.mxu0 0
    %735 = vmatpush.bf16.msra.mxu0 0
    %736 = vmatpush.bf16.msra.mxu0 0
    %737 = vmatpush.bf16.msra.mxu0 %v725
    %738 = vmatpush.bf16.msra.mxu0 %v724
    %739 = vmatmul.bf16.gmra.mxu0 %v729
    %v740 = vpop.f32.mrf.mxu0
    %v741 = vadd.f32 0.0, %v740
    %v742 = vpop.f32.mrf.mxu0
    %743 = vdwg.mxu0
    %v744 = vadd.f32 %v662, %v741
    %745 = vmatpush.bf16.msra.mxu0 0
    %746 = vmatpush.bf16.msra.mxu0 0
    %747 = vmatpush.bf16.msra.mxu0 0
    %748 = vmatpush.bf16.msra.mxu0 0
    %749 = vmatpush.bf16.msra.mxu0 0
    %750 = vmatpush.bf16.msra.mxu0 0
    %751 = vmatpush.bf16.msra.mxu0 %v223
    %752 = vmatpush.bf16.msra.mxu0 %v222
    %753 = vmatmul.bf16.gmra.mxu0 %v680
    %v754 = vpop.f32.mrf.mxu0
    %v755 = vadd.f32 0.0, %v754
    %v756 = vpop.f32.mrf.mxu0
    %757 = vdwg.mxu0
    %v758 = vadd.f32 %v147, %v755
    %v759 = vtanh.pop %v758
    %v760 = vpack.c.bf16 %v759, %v759
    %v762 = vsel %vm107, %v760, 0
    %764 = vmatpush.bf16.msra.mxu0 0
    %765 = vmatpush.bf16.msra.mxu0 0
    %766 = vmatpush.bf16.msra.mxu0 0
    %767 = vmatpush.bf16.msra.mxu0 0
    %768 = vmatpush.bf16.msra.mxu0 0
    %769 = vmatpush.bf16.msra.mxu0 0
    %770 = vmatpush.bf16.msra.mxu0 %v160
    %771 = vmatpush.bf16.msra.mxu0 %v159
    %772 = vmatmul.bf16.gmra.mxu0 %v762
    %v773 = vpop.f32.mrf.mxu0
    %v774 = vadd.f32 %v61, %v773
    %v775 = vpop.f32.mrf.mxu0
    %776 = vdwg.mxu0
    %777 = vmatpush.bf16.msra.mxu0 0
    %778 = vmatpush.bf16.msra.mxu0 0
    %779 = vmatpush.bf16.msra.mxu0 0
    %780 = vmatpush.bf16.msra.mxu0 0
    %781 = vmatpush.bf16.msra.mxu0 0
    %782 = vmatpush.bf16.msra.mxu0 0
    %783 = vmatpush.bf16.msra.mxu0 %v188
    %784 = vmatpush.bf16.msra.mxu0 %v187
    %785 = vmatmul.bf16.gmra.mxu0 %v729
    %v786 = vpop.f32.mrf.mxu0
    %v787 = vadd.f32 0.0, %v786
    %v788 = vpop.f32.mrf.mxu0
    %789 = vdwg.mxu0
    %v790 = vadd.f32 %v774, %v787
    %v791 = vtanh.pop %v790
    %v792 = vpack.c.bf16 %v791, %v791
    %s793 = scalar_lea.vmem [#allocation2], 112
    %v794 = vld [vmem:[%s793] sm:$0xf]
    %v795 = vld [vmem:[%s793 + $0x4] sm:$0xf]
    %v796 = vld [vmem:[%s793 + $0x8] sm:$0xf]
    %v797 = vld [vmem:[%s793 + $0xc] sm:$0xf]
    %v802 = vunpack.c.l.b16 %v794
    %v803 = vunpack.c.l.b16 %v795
    %v804 = vunpack.c.l.b16 %v796
    %v805 = vunpack.c.l.b16 %v797
    %v806 = vpack.c.b16 %v803, %v802
    %v807 = vpack.c.b16 %v805, %v804
    %v811 = vsel %vm107, %v792, 0
    %813 = vmatpush.bf16.msra.mxu0 0
    %814 = vmatpush.bf16.msra.mxu0 0
    %815 = vmatpush.bf16.msra.mxu0 0
    %816 = vmatpush.bf16.msra.mxu0 0
    %817 = vmatpush.bf16.msra.mxu0 0
    %818 = vmatpush.bf16.msra.mxu0 0
    %819 = vmatpush.bf16.msra.mxu0 %v807
    %820 = vmatpush.bf16.msra.mxu0 %v806
    %821 = vmatmul.bf16.gmra.mxu0 %v811
    %v822 = vpop.f32.mrf.mxu0
    %v823 = vadd.f32 0.0, %v822
    %v824 = vpop.f32.mrf.mxu0
    %825 = vdwg.mxu0
    %v826 = vadd.f32 %v744, %v823
    %v827 = vld [vmem:[%s5] sm:$0x1]
    %v829 = vperm.slane %v827, 0
    %v831 = vadd.f32 %v826, %v829
    %832 = vst [vmem:[%s6] sm:$0xff] %v831
    // Predicated region
    $region30: #{rnn_forward.1} parent=1 // pred_check
      _
    $region31: #{rnn_forward.1} parent=1 // pred_check_branch
      %834 = sbr.rel (0) target = $region33
    $region32: #{rnn_forward.1} parent=1 // pred_region
      _
    $region33: #{rnn_forward.1} parent=1 // pred_fallthru
      _
    // Predicated region
    $region34: #{rnn_forward.1} parent=1 // pred_check
      _
    $region35: #{rnn_forward.1} parent=1 // pred_check_branch
      %836 = sbr.rel (0) target = $region37
    $region36: #{rnn_forward.1} parent=1 // pred_region
      _
    $region37: #{rnn_forward.1} parent=1 // pred_fallthru
      _
    %837 = vsyncpa [#allocation3], 1

</llo_original>
